<compile_context>
chip_gen: v5e
topology: v5e:2x2
jax: 0.10.0
libtpu: 0.0.40
codegen_flags: <defaults>
</compile_context>

<pallas_src>
import functools

import jax
import jax.numpy as jnp
from jax import lax
from jax.experimental import pallas as pl
from jax.experimental.pallas import tpu as pltpu

HIDDEN_SIZE = 32


def _dot_t(a, b):
    # a: (M, K), b: (N, K) -> (M, N) in f32  (a @ b.T without materializing b.T)
    return lax.dot_general(a, b, (((1,), (1,)), ((), ())),
                           preferred_element_type=jnp.float32)


def biaffine_kernel(e_ref, d_ref, wme_ref, bme_ref, wmd_ref, bmd_ref,
                    we_ref, wd_ref, uflat_ref, bias_ref, out_ref, *, mm_dtype):
    # e_ref: (bb, Le, E)    d_ref: (bb, Ld, D)
    # wme_ref: (H, E)  bme_ref: (1, H)   wmd_ref: (H, D)  bmd_ref: (1, H)
    # we_ref/wd_ref: (L, H)   uflat_ref: (H, L*H)  (U permuted to (H, L, H))
    # bias_ref: (L,) in SMEM           out_ref: (bb, L, Ld, Le)
    bb, Le, E = e_ref.shape
    _, Ld, D = d_ref.shape
    L, H = we_ref.shape

    cast = lambda x: x.astype(mm_dtype)

    # ReLU MLPs with the batch folded into M (one matmul each, f32 accumulate,
    # f32 elementwise — bf16 only touches the MXU operands).
    e = cast(e_ref[...].reshape(bb * Le, E))
    d = cast(d_ref[...].reshape(bb * Ld, D))
    e_h = jnp.maximum(_dot_t(e, cast(wme_ref[...])) + bme_ref[...], 0.0)  # (bb*Le, H)
    d_h = jnp.maximum(_dot_t(d, cast(wmd_ref[...])) + bmd_ref[...], 0.0)  # (bb*Ld, H)
    e_h_m = cast(e_h)
    d_h_m = cast(d_h)

    # Label-batched linear scores and bilinear "push": 3 matmuls total instead
    # of 3*L slivers with M or N == 1.
    out_e = _dot_t(cast(we_ref[...]), e_h_m)        # (L, bb*Le)  = W_e @ e_h.T
    out_d = _dot_t(d_h_m, cast(wd_ref[...]))        # (bb*Ld, L)  = d_h @ W_d.T
    du = jnp.dot(d_h_m, cast(uflat_ref[...]),
                 preferred_element_type=jnp.float32)    # (bb*Ld, L*H)
    du_m = cast(du)

    # Final bilinear contraction per (batch, label); bb and L are small and
    # static here -- switch to lax.fori_loop(unroll=True) if they grow.
    tiles = []
    for b in range(bb):
        e_h_b = e_h_m[b * Le:(b + 1) * Le, :]                     # (Le, H)
        for l in range(L):
            du_bl = du_m[b * Ld:(b + 1) * Ld, l * H:(l + 1) * H]  # (Ld, H)
            out_u = _dot_t(du_bl, e_h_b)                          # (Ld, Le) f32
            score = (out_u
                     + out_d[b * Ld:(b + 1) * Ld, l:l + 1]        # (Ld, 1)
                     + out_e[l:l + 1, b * Le:(b + 1) * Le]        # (1, Le)
                     + bias_ref[l])                               # scalar (SMEM)
            tiles.append(score[None])
    # Single contiguous store of the whole output block for this grid step.
    out_ref[...] = jnp.concatenate(tiles, axis=0).reshape(bb, L, Ld, Le)


def biaffine_attention(e_outputs, d_outputs, params, *, batch_block=None,
                       matmul_dtype=jnp.float32):
    B, Le, E = e_outputs.shape
    _, Ld, D = d_outputs.shape
    L, H = params["W_e"].shape

    bb = B if batch_block is None else batch_block
    assert B % bb == 0, (B, bb)

    # (L, H, H) -> (H, L*H) so d_h @ U_flat computes d_h @ U[l] for every label
    # with one MXU call (sliced per label inside the kernel).
    u_flat = jnp.transpose(params["U"], (1, 0, 2)).reshape(H, L * H)
    bias = params["b"].reshape(L)

    out = pl.pallas_call(
        functools.partial(biaffine_kernel, mm_dtype=matmul_dtype),
        out_shape=jax.ShapeDtypeStruct((B, L, Ld, Le), jnp.float32),
        grid=(B // bb,),
        in_specs=[
            pl.BlockSpec((bb, Le, E), lambda i: (i, 0, 0)),
            pl.BlockSpec((bb, Ld, D), lambda i: (i, 0, 0)),
            pl.BlockSpec((H, E), lambda i: (0, 0)),
            pl.BlockSpec((1, H), lambda i: (0, 0)),
            pl.BlockSpec((H, D), lambda i: (0, 0)),
            pl.BlockSpec((1, H), lambda i: (0, 0)),
            pl.BlockSpec((L, H), lambda i: (0, 0)),
            pl.BlockSpec((L, H), lambda i: (0, 0)),
            pl.BlockSpec((H, L * H), lambda i: (0, 0)),
            pl.BlockSpec(memory_space=pltpu.MemorySpace.SMEM),   # per-label bias
        ],
        out_specs=pl.BlockSpec((bb, L, Ld, Le), lambda i: (i, 0, 0, 0)),
        compiler_params=pltpu.CompilerParams(
            dimension_semantics=("parallel",)),
    )(e_outputs, d_outputs,
      params["w_e_mlp"], params["b_e_mlp"].reshape(1, H),
      params["w_d_mlp"], params["b_d_mlp"].reshape(1, H),
      params["W_e"], params["W_d"], u_flat, bias)

    # PyTorch layout: (out_e + out_d + out_u + b).permute(0, 2, 3, 1).
    # TODO(synk): a trailing dim of num_labels is inherently lane-sparse; if the
    # consumer can take (B, L, Ld, Le) directly, drop this transpose.
    return jnp.transpose(out, (0, 2, 3, 1))        # (B, Ld, Le, L)


def biaffine_reference(e_out, d_out, p):
    e_h = jax.nn.relu(e_out @ p["w_e_mlp"].T + p["b_e_mlp"])
    d_h = jax.nn.relu(d_out @ p["w_d_mlp"].T + p["b_d_mlp"])
    out_e = jnp.einsum("lh,bih->bli", p["W_e"], e_h)[:, :, None, :]
    out_d = jnp.einsum("lh,bjh->blj", p["W_d"], d_h)[:, :, :, None]
    out_u = jnp.einsum("bjh,lhk,bik->blji", d_h, p["U"], e_h)
    out = out_e + out_d + out_u + p["b"][None]
    return jnp.transpose(out, (0, 2, 3, 1))


def _xavier_normal(key, shape):
    fan_in, fan_out = shape[-1], shape[-2]
    std = jnp.sqrt(2.0 / (fan_in + fan_out))
    return std * jax.random.normal(key, shape, dtype=jnp.float32)


if __name__ == "__main__":
    B, Le, Ld = 2, 16, 8
    encoder_size = decoder_size = HIDDEN_SIZE       # 32, as stated in the docstring
    H = HIDDEN_SIZE
    num_labels = 2

    key = jax.random.PRNGKey(0)
    keys = jax.random.split(key, 9)

    params = {
        # nn.Linear(encoder_size, hidden) weights/bias (deterministic init)
        "w_e_mlp": 0.1 * jax.random.normal(keys[0], (H, encoder_size), jnp.float32),
        "b_e_mlp": 0.1 * jax.random.normal(keys[1], (H,), jnp.float32),
        "w_d_mlp": 0.1 * jax.random.normal(keys[2], (H, decoder_size), jnp.float32),
        "b_d_mlp": 0.1 * jax.random.normal(keys[3], (H,), jnp.float32),
        # biaffine parameters (xavier-normal like the PyTorch module)
        "W_e": _xavier_normal(keys[4], (num_labels, H)),
        "W_d": _xavier_normal(keys[5], (num_labels, H)),
        "U": _xavier_normal(keys[6], (num_labels, H, H)),
        "b": jnp.zeros((num_labels, 1, 1), jnp.float32),
    }

    e_outputs = jax.random.normal(keys[7], (B, Le, encoder_size), jnp.float32)
    d_outputs = jax.random.normal(keys[8], (B, Ld, decoder_size), jnp.float32)

    ref = biaffine_reference(e_outputs, d_outputs, params)

    # f32 path (default) — exact match against the reference.
    out = biaffine_attention(e_outputs, d_outputs, params)
    out = jax.block_until_ready(out)
    assert out.shape == (B, Ld, Le, num_labels), out.shape
    assert jnp.allclose(out, ref, atol=1e-4, rtol=1e-4), \
        float(jnp.max(jnp.abs(out - ref)))

    # bf16 MXU-operand path (v6e/v7x rate benefit); accumulation stays f32,
    # so the result is only loosely compared.
    out_bf16 = biaffine_attention(e_outputs, d_outputs, params,
                                  matmul_dtype=jnp.bfloat16)
    out_bf16 = jax.block_until_ready(out_bf16)
    assert out_bf16.shape == (B, Ld, Le, num_labels), out_bf16.shape
    assert float(jnp.max(jnp.abs(out_bf16 - ref))) < 0.25, \
        float(jnp.max(jnp.abs(out_bf16 - ref)))

    print("KERNEL_OK")
</pallas_src>

<mosaic_0001>
module attributes {stable_mosaic.version = 11 : i64} {
  func.func @biaffine_kernel(%arg0: i32, %arg1: memref<2x16x32xf32, #tpu.memory_space<vmem>>, %arg2: memref<2x8x32xf32, #tpu.memory_space<vmem>>, %arg3: memref<32x32xf32, #tpu.memory_space<vmem>>, %arg4: memref<1x32xf32, #tpu.memory_space<vmem>>, %arg5: memref<32x32xf32, #tpu.memory_space<vmem>>, %arg6: memref<1x32xf32, #tpu.memory_space<vmem>>, %arg7: memref<2x32xf32, #tpu.memory_space<vmem>>, %arg8: memref<2x32xf32, #tpu.memory_space<vmem>>, %arg9: memref<32x64xf32, #tpu.memory_space<vmem>>, %arg10: memref<2xf32, #tpu.memory_space<smem>>, %arg11: memref<2x2x8x16xf32, #tpu.memory_space<vmem>>) attributes {dimension_semantics = [#tpu.dimension_semantics<parallel>], iteration_bounds = array<i64: 1>, scalar_prefetch = 0 : i64, scratch_operands = 0 : i64, tpu.core_type = #tpu.core_type<tc>, window_params = [{transform_indices = @transform_0, window_bounds = array<i64: 2, 16, 32>}, {transform_indices = @transform_1, window_bounds = array<i64: 2, 8, 32>}, {pipeline_mode = #tpu.pipeline_mode<synchronous>, transform_indices = @transform_2, window_bounds = array<i64: 32, 32>}, {pipeline_mode = #tpu.pipeline_mode<synchronous>, transform_indices = @transform_3, window_bounds = array<i64: 1, 32>}, {pipeline_mode = #tpu.pipeline_mode<synchronous>, transform_indices = @transform_4, window_bounds = array<i64: 32, 32>}, {pipeline_mode = #tpu.pipeline_mode<synchronous>, transform_indices = @transform_5, window_bounds = array<i64: 1, 32>}, {pipeline_mode = #tpu.pipeline_mode<synchronous>, transform_indices = @transform_6, window_bounds = array<i64: 2, 32>}, {pipeline_mode = #tpu.pipeline_mode<synchronous>, transform_indices = @transform_7, window_bounds = array<i64: 2, 32>}, {pipeline_mode = #tpu.pipeline_mode<synchronous>, transform_indices = @transform_8, window_bounds = array<i64: 32, 64>}, {transform_indices = @transform_9, window_bounds = array<i64: 2>}, {transform_indices = @transform_10, window_bounds = array<i64: 2, 2, 8, 16>}]} {
    %c0 = arith.constant 0 : index
    %c0_0 = arith.constant 0 : index
    %c0_1 = arith.constant 0 : index
    %0 = vector.load %arg1[%c0, %c0_0, %c0_1] : memref<2x16x32xf32, #tpu.memory_space<vmem>>, vector<2x16x32xf32>
    %1 = vector.shape_cast %0 : vector<2x16x32xf32> to vector<32x32xf32>
    %c0_2 = arith.constant 0 : index
    %c0_3 = arith.constant 0 : index
    %c0_4 = arith.constant 0 : index
    %2 = vector.load %arg2[%c0_2, %c0_3, %c0_4] : memref<2x8x32xf32, #tpu.memory_space<vmem>>, vector<2x8x32xf32>
    %3 = vector.shape_cast %2 : vector<2x8x32xf32> to vector<16x32xf32>
    %c0_5 = arith.constant 0 : index
    %c0_6 = arith.constant 0 : index
    %4 = vector.load %arg3[%c0_5, %c0_6] : memref<32x32xf32, #tpu.memory_space<vmem>>, vector<32x32xf32>
    %cst = arith.constant dense<0.000000e+00> : vector<32x32xf32>
    %5 = tpu.matmul %1, %4, %cst {dimension_numbers = #tpu.dot_dimension_numbers<[1], [1], [0], [0], [0, 0, 1, 0], [], []>} : vector<32x32xf32>, vector<32x32xf32>, vector<32x32xf32> -> vector<32x32xf32>
    %c0_7 = arith.constant 0 : index
    %c0_8 = arith.constant 0 : index
    %6 = vector.load %arg4[%c0_7, %c0_8] : memref<1x32xf32, #tpu.memory_space<vmem>>, vector<1x32xf32>
    %7 = vector.broadcast %6 : vector<1x32xf32> to vector<32x32xf32>
    %8 = arith.addf %5, %7 : vector<32x32xf32>
    %cst_9 = arith.constant 0.000000e+00 : f32
    %9 = vector.broadcast %cst_9 : f32 to vector<32x32xf32>
    %10 = arith.maximumf %8, %9 : vector<32x32xf32>
    %c0_10 = arith.constant 0 : index
    %c0_11 = arith.constant 0 : index
    %11 = vector.load %arg5[%c0_10, %c0_11] : memref<32x32xf32, #tpu.memory_space<vmem>>, vector<32x32xf32>
    %cst_12 = arith.constant dense<0.000000e+00> : vector<16x32xf32>
    %12 = tpu.matmul %3, %11, %cst_12 {dimension_numbers = #tpu.dot_dimension_numbers<[1], [1], [0], [0], [0, 0, 1, 0], [], []>} : vector<16x32xf32>, vector<32x32xf32>, vector<16x32xf32> -> vector<16x32xf32>
    %c0_13 = arith.constant 0 : index
    %c0_14 = arith.constant 0 : index
    %13 = vector.load %arg6[%c0_13, %c0_14] : memref<1x32xf32, #tpu.memory_space<vmem>>, vector<1x32xf32>
    %14 = vector.broadcast %13 : vector<1x32xf32> to vector<16x32xf32>
    %15 = arith.addf %12, %14 : vector<16x32xf32>
    %cst_15 = arith.constant 0.000000e+00 : f32
    %16 = vector.broadcast %cst_15 : f32 to vector<16x32xf32>
    %17 = arith.maximumf %15, %16 : vector<16x32xf32>
    %c0_16 = arith.constant 0 : index
    %c0_17 = arith.constant 0 : index
    %18 = vector.load %arg7[%c0_16, %c0_17] : memref<2x32xf32, #tpu.memory_space<vmem>>, vector<2x32xf32>
    %cst_18 = arith.constant dense<0.000000e+00> : vector<2x32xf32>
    %19 = tpu.matmul %18, %10, %cst_18 {dimension_numbers = #tpu.dot_dimension_numbers<[1], [1], [0], [0], [0, 0, 1, 0], [], []>} : vector<2x32xf32>, vector<32x32xf32>, vector<2x32xf32> -> vector<2x32xf32>
    %c0_19 = arith.constant 0 : index
    %c0_20 = arith.constant 0 : index
    %20 = vector.load %arg8[%c0_19, %c0_20] : memref<2x32xf32, #tpu.memory_space<vmem>>, vector<2x32xf32>
    %cst_21 = arith.constant dense<0.000000e+00> : vector<16x2xf32>
    %21 = tpu.matmul %17, %20, %cst_21 {dimension_numbers = #tpu.dot_dimension_numbers<[1], [1], [0], [0], [0, 0, 1, 0], [], []>} : vector<16x32xf32>, vector<2x32xf32>, vector<16x2xf32> -> vector<16x2xf32>
    %c0_22 = arith.constant 0 : index
    %c0_23 = arith.constant 0 : index
    %22 = vector.load %arg9[%c0_22, %c0_23] : memref<32x64xf32, #tpu.memory_space<vmem>>, vector<32x64xf32>
    %cst_24 = arith.constant dense<0.000000e+00> : vector<16x64xf32>
    %23 = tpu.matmul %17, %22, %cst_24 {dimension_numbers = #tpu.dot_dimension_numbers<[1], [0], [0], [1], [0, 0, 1, 1], [], []>} : vector<16x32xf32>, vector<32x64xf32>, vector<16x64xf32> -> vector<16x64xf32>
    %24 = vector.extract_strided_slice %10 {offsets = [0, 0], sizes = [16, 32], strides = [1, 1]} : vector<32x32xf32> to vector<16x32xf32>
    %25 = vector.extract_strided_slice %23 {offsets = [0, 0], sizes = [8, 32], strides = [1, 1]} : vector<16x64xf32> to vector<8x32xf32>
    %cst_25 = arith.constant dense<0.000000e+00> : vector<8x16xf32>
    %26 = tpu.matmul %25, %24, %cst_25 {dimension_numbers = #tpu.dot_dimension_numbers<[1], [1], [0], [0], [0, 0, 1, 0], [], []>} : vector<8x32xf32>, vector<16x32xf32>, vector<8x16xf32> -> vector<8x16xf32>
    %27 = vector.extract_strided_slice %21 {offsets = [0, 0], sizes = [8, 1], strides = [1, 1]} : vector<16x2xf32> to vector<8x1xf32>
    %28 = vector.broadcast %27 : vector<8x1xf32> to vector<8x16xf32>
    %29 = arith.addf %26, %28 : vector<8x16xf32>
    %30 = vector.extract_strided_slice %19 {offsets = [0, 0], sizes = [1, 16], strides = [1, 1]} : vector<2x32xf32> to vector<1x16xf32>
    %31 = vector.broadcast %30 : vector<1x16xf32> to vector<8x16xf32>
    %32 = arith.addf %29, %31 : vector<8x16xf32>
    %c0_26 = arith.constant 0 : index
    %33 = memref.load %arg10[%c0_26] : memref<2xf32, #tpu.memory_space<smem>>
    %34 = vector.broadcast %33 : f32 to vector<8x16xf32>
    %35 = arith.addf %32, %34 : vector<8x16xf32>
    %36 = vector.shape_cast %35 : vector<8x16xf32> to vector<1x8x16xf32>
    %37 = vector.extract_strided_slice %23 {offsets = [0, 32], sizes = [8, 32], strides = [1, 1]} : vector<16x64xf32> to vector<8x32xf32>
    %cst_27 = arith.constant dense<0.000000e+00> : vector<8x16xf32>
    %38 = tpu.matmul %37, %24, %cst_27 {dimension_numbers = #tpu.dot_dimension_numbers<[1], [1], [0], [0], [0, 0, 1, 0], [], []>} : vector<8x32xf32>, vector<16x32xf32>, vector<8x16xf32> -> vector<8x16xf32>
    %39 = vector.extract_strided_slice %21 {offsets = [0, 1], sizes = [8, 1], strides = [1, 1]} : vector<16x2xf32> to vector<8x1xf32>
    %40 = vector.broadcast %39 : vector<8x1xf32> to vector<8x16xf32>
    %41 = arith.addf %38, %40 : vector<8x16xf32>
    %42 = vector.extract_strided_slice %19 {offsets = [1, 0], sizes = [1, 16], strides = [1, 1]} : vector<2x32xf32> to vector<1x16xf32>
    %43 = vector.broadcast %42 : vector<1x16xf32> to vector<8x16xf32>
    %44 = arith.addf %41, %43 : vector<8x16xf32>
    %c1 = arith.constant 1 : index
    %45 = memref.load %arg10[%c1] : memref<2xf32, #tpu.memory_space<smem>>
    %46 = vector.broadcast %45 : f32 to vector<8x16xf32>
    %47 = arith.addf %44, %46 : vector<8x16xf32>
    %48 = vector.shape_cast %47 : vector<8x16xf32> to vector<1x8x16xf32>
    %49 = vector.extract_strided_slice %10 {offsets = [16, 0], sizes = [16, 32], strides = [1, 1]} : vector<32x32xf32> to vector<16x32xf32>
    %50 = vector.extract_strided_slice %23 {offsets = [8, 0], sizes = [8, 32], strides = [1, 1]} : vector<16x64xf32> to vector<8x32xf32>
    %cst_28 = arith.constant dense<0.000000e+00> : vector<8x16xf32>
    %51 = tpu.matmul %50, %49, %cst_28 {dimension_numbers = #tpu.dot_dimension_numbers<[1], [1], [0], [0], [0, 0, 1, 0], [], []>} : vector<8x32xf32>, vector<16x32xf32>, vector<8x16xf32> -> vector<8x16xf32>
    %52 = vector.extract_strided_slice %21 {offsets = [8, 0], sizes = [8, 1], strides = [1, 1]} : vector<16x2xf32> to vector<8x1xf32>
    %53 = vector.broadcast %52 : vector<8x1xf32> to vector<8x16xf32>
    %54 = arith.addf %51, %53 : vector<8x16xf32>
    %55 = vector.extract_strided_slice %19 {offsets = [0, 16], sizes = [1, 16], strides = [1, 1]} : vector<2x32xf32> to vector<1x16xf32>
    %56 = vector.broadcast %55 : vector<1x16xf32> to vector<8x16xf32>
    %57 = arith.addf %54, %56 : vector<8x16xf32>
    %c0_29 = arith.constant 0 : index
    %58 = memref.load %arg10[%c0_29] : memref<2xf32, #tpu.memory_space<smem>>
    %59 = vector.broadcast %58 : f32 to vector<8x16xf32>
    %60 = arith.addf %57, %59 : vector<8x16xf32>
    %61 = vector.shape_cast %60 : vector<8x16xf32> to vector<1x8x16xf32>
    %62 = vector.extract_strided_slice %23 {offsets = [8, 32], sizes = [8, 32], strides = [1, 1]} : vector<16x64xf32> to vector<8x32xf32>
    %cst_30 = arith.constant dense<0.000000e+00> : vector<8x16xf32>
    %63 = tpu.matmul %62, %49, %cst_30 {dimension_numbers = #tpu.dot_dimension_numbers<[1], [1], [0], [0], [0, 0, 1, 0], [], []>} : vector<8x32xf32>, vector<16x32xf32>, vector<8x16xf32> -> vector<8x16xf32>
    %64 = vector.extract_strided_slice %21 {offsets = [8, 1], sizes = [8, 1], strides = [1, 1]} : vector<16x2xf32> to vector<8x1xf32>
    %65 = vector.broadcast %64 : vector<8x1xf32> to vector<8x16xf32>
    %66 = arith.addf %63, %65 : vector<8x16xf32>
    %67 = vector.extract_strided_slice %19 {offsets = [1, 16], sizes = [1, 16], strides = [1, 1]} : vector<2x32xf32> to vector<1x16xf32>
    %68 = vector.broadcast %67 : vector<1x16xf32> to vector<8x16xf32>
    %69 = arith.addf %66, %68 : vector<8x16xf32>
    %c1_31 = arith.constant 1 : index
    %70 = memref.load %arg10[%c1_31] : memref<2xf32, #tpu.memory_space<smem>>
    %71 = vector.broadcast %70 : f32 to vector<8x16xf32>
    %72 = arith.addf %69, %71 : vector<8x16xf32>
    %73 = vector.shape_cast %72 : vector<8x16xf32> to vector<1x8x16xf32>
    %74 = tpu.concatenate %36, %48, %61, %73 in 0 : vector<1x8x16xf32>, vector<1x8x16xf32>, vector<1x8x16xf32>, vector<1x8x16xf32> -> vector<4x8x16xf32>
    %75 = vector.shape_cast %74 : vector<4x8x16xf32> to vector<2x2x8x16xf32>
    %c0_32 = arith.constant 0 : index
    %c0_33 = arith.constant 0 : index
    %c0_34 = arith.constant 0 : index
    %c0_35 = arith.constant 0 : index
    %76 = vector.load %arg11[%c0_32, %c0_33, %c0_34, %c0_35] : memref<2x2x8x16xf32, #tpu.memory_space<vmem>>, vector<2x2x8x16xf32>
    tpu.vector_store %arg11[%c0_32, %c0_33, %c0_34, %c0_35], %75 {strides = array<i32>} : memref<2x2x8x16xf32, #tpu.memory_space<vmem>>, vector<2x2x8x16xf32>,
    return
  }
  func.func @transform_0(%arg0: i32) -> (i32, i32, i32) {
    %c0_i32 = arith.constant 0 : i32
    %c0_i32_0 = arith.constant 0 : i32
    %c0_i32_1 = arith.constant 0 : i32
    return %arg0, %c0_i32, %c0_i32_0 : i32, i32, i32
  }
  func.func @transform_1(%arg0: i32) -> (i32, i32, i32) {
    %c0_i32 = arith.constant 0 : i32
    %c0_i32_0 = arith.constant 0 : i32
    %c0_i32_1 = arith.constant 0 : i32
    return %arg0, %c0_i32, %c0_i32_0 : i32, i32, i32
  }
  func.func @transform_2(%arg0: i32) -> (i32, i32) {
    %c0_i32 = arith.constant 0 : i32
    %c0_i32_0 = arith.constant 0 : i32
    %c0_i32_1 = arith.constant 0 : i32
    return %c0_i32, %c0_i32_0 : i32, i32
  }
  func.func @transform_3(%arg0: i32) -> (i32, i32) {
    %c0_i32 = arith.constant 0 : i32
    %c0_i32_0 = arith.constant 0 : i32
    %c0_i32_1 = arith.constant 0 : i32
    return %c0_i32, %c0_i32_0 : i32, i32
  }
  func.func @transform_4(%arg0: i32) -> (i32, i32) {
    %c0_i32 = arith.constant 0 : i32
    %c0_i32_0 = arith.constant 0 : i32
    %c0_i32_1 = arith.constant 0 : i32
    return %c0_i32, %c0_i32_0 : i32, i32
  }
  func.func @transform_5(%arg0: i32) -> (i32, i32) {
    %c0_i32 = arith.constant 0 : i32
    %c0_i32_0 = arith.constant 0 : i32
    %c0_i32_1 = arith.constant 0 : i32
    return %c0_i32, %c0_i32_0 : i32, i32
  }
  func.func @transform_6(%arg0: i32) -> (i32, i32) {
    %c0_i32 = arith.constant 0 : i32
    %c0_i32_0 = arith.constant 0 : i32
    %c0_i32_1 = arith.constant 0 : i32
    return %c0_i32, %c0_i32_0 : i32, i32
  }
  func.func @transform_7(%arg0: i32) -> (i32, i32) {
    %c0_i32 = arith.constant 0 : i32
    %c0_i32_0 = arith.constant 0 : i32
    %c0_i32_1 = arith.constant 0 : i32
    return %c0_i32, %c0_i32_0 : i32, i32
  }
  func.func @transform_8(%arg0: i32) -> (i32, i32) {
    %c0_i32 = arith.constant 0 : i32
    %c0_i32_0 = arith.constant 0 : i32
    %c0_i32_1 = arith.constant 0 : i32
    return %c0_i32, %c0_i32_0 : i32, i32
  }
  func.func @transform_9(%arg0: i32) -> i32 {
    %c0_i32 = arith.constant 0 : i32
    %c0_i32_0 = arith.constant 0 : i32
    return %c0_i32 : i32
  }
  func.func @transform_10(%arg0: i32) -> (i32, i32, i32, i32) {
    %c0_i32 = arith.constant 0 : i32
    %c0_i32_0 = arith.constant 0 : i32
    %c0_i32_1 = arith.constant 0 : i32
    %c0_i32_2 = arith.constant 0 : i32
    return %arg0, %c0_i32, %c0_i32_0, %c0_i32_1 : i32, i32, i32, i32
  }
}

</mosaic_0001>

<llo_original>
// kernel: tpu_custom_call.1
$region0: #{tpu_custom_call.1}
  #allocation0 [shape = 'u32[]', space=smem, size = 0x4, offset = 0x4, fixed_abs, tag = 'smem constant byte address 0x4 - core index']
  #allocation1 [shape = 'u32[72,128]{1,0:T(1,128)}', space=vmem, size = 0x9000, scoped, tag = 'internal scratch']
  %s0 = inlined_call_operand.hbm [shape: f32[2,16,32], index: 0, kind: input, shape index: {}]
  %s1 = inlined_call_operand.hbm [shape: f32[2,8,32], index: 1, kind: input, shape index: {}]
  %s2 = inlined_call_operand.hbm [shape: f32[32,32], index: 2, kind: input, shape index: {}]
  %s3 = inlined_call_operand.hbm [shape: f32[1,32], index: 3, kind: input, shape index: {}]
  %s4 = inlined_call_operand.hbm [shape: f32[32,32], index: 4, kind: input, shape index: {}]
  %s5 = inlined_call_operand.hbm [shape: f32[1,32], index: 5, kind: input, shape index: {}]
  %s6 = inlined_call_operand.vmem [shape: f32[2,32], index: 6, kind: input, shape index: {}]
  %s7 = inlined_call_operand.vmem [shape: f32[2,32], index: 7, kind: input, shape index: {}]
  %s8 = inlined_call_operand.hbm [shape: f32[32,64], index: 8, kind: input, shape index: {}]
  %s9 = inlined_call_operand.vmem [shape: f32[2], index: 9, kind: input, shape index: {}]
  %s10 = inlined_call_operand.hbm [shape: f32[2,2,8,16], index: 10, kind: output, shape index: {}]
  %s11 = sld [smem:[#allocation0]]
  $region82: #{tpu_custom_call.1} parent=0
    _
  %s13 = ssub.s32 1, %s11
  %s14 = scalar_select 0, %s13, %s11
  $region1: #{tpu_custom_call.1} parent=0
    #allocation2 [shape = 'u8[16384]{0}', space=vmem, size = 0x4000, scoped, tag = 'input window, operand 0, single buffered']
    #allocation3 [shape = 's32[1]{0}', space=sflag, size = 0x4, scoped, tag = 'scoped memory for tpu_custom_call.1']
    #allocation4 [shape = 's32[1]{0}', space=sflag, size = 0x4, scoped, tag = 'scoped memory for tpu_custom_call.1']
    #allocation5 [shape = 's32[1]{0}', space=sflag, size = 0x4, scoped, tag = 'scoped memory for tpu_custom_call.1']
    #allocation6 [shape = 'u8[8192]{0}', space=vmem, size = 0x2000, scoped, tag = 'input window, operand 1, single buffered']
    #allocation7 [shape = 's32[1]{0}', space=sflag, size = 0x4, scoped, tag = 'scoped memory for tpu_custom_call.1']
    #allocation8 [shape = 'u8[16384]{0}', space=vmem, size = 0x4000, scoped, tag = 'input window, operand 2, single buffered']
    #allocation9 [shape = 'u8[512]{0}', space=vmem, size = 0x400, scoped, tag = 'input window, operand 3, single buffered']
    #allocation10 [shape = 's32[1]{0}', space=sflag, size = 0x4, scoped, tag = 'scoped memory for tpu_custom_call.1']
    #allocation11 [shape = 'u8[16384]{0}', space=vmem, size = 0x4000, scoped, tag = 'input window, operand 4, single buffered']
    #allocation12 [shape = 'u8[512]{0}', space=vmem, size = 0x400, scoped, tag = 'input window, operand 5, single buffered']
    #allocation13 [shape = 's32[1]{0}', space=sflag, size = 0x4, scoped, tag = 'scoped memory for tpu_custom_call.1']
    #allocation14 [shape = 'u8[16384]{0}', space=vmem, size = 0x4000, scoped, tag = 'input window, operand 8, single buffered']
    #allocation15 [shape = 'u8[512]{0}', space=smem, size = 0x200, scoped, tag = 'input window, operand 9, single buffered']
    #allocation16 [shape = 'u8[16384]{0}', space=vmem, size = 0x4000, scoped, tag = 'output window, operand 0, single buffered']
    %15 = vsyncpa [#allocation3], 0
    %16 = vsyncpa [#allocation7], 0
    %17 = vsyncpa [#allocation10], 0
    %18 = vsyncpa [#allocation13], 0
    %19 = vsyncpa [#allocation5], 0
    %20 = vsyncpa [#allocation4], 0
    // Predicated region
    $region2: #{tpu_custom_call.1} parent=1 // pred_check
      _
    $region3: #{tpu_custom_call.1} parent=1 // pred_check_branch
      %22 = sbr.rel (0) target = $region5
    $region4: #{tpu_custom_call.1} parent=1 // pred_region
      %24 = vsyncadd [#allocation3], 0
      %s25 = sshll.u32 %s0, 4
      %s26 = int_to_ptr.hbm [resolvable:$true] %s25
      %s27 = sshll.u32 [#allocation2], 4
      %s28 = int_to_ptr.vmem [resolvable:$true] %s27
      %33 = dma.hbm_to_vmem [thread:$0]  %s26, 512, %s28, [#allocation3], 128, 128, 8
    $region5: #{tpu_custom_call.1} parent=1 // pred_fallthru
      _
    // Predicated region
    $region6: #{tpu_custom_call.1} parent=1 // pred_check
      _
    $region7: #{tpu_custom_call.1} parent=1 // pred_check_branch
      %35 = sbr.rel (0) target = $region9
    $region8: #{tpu_custom_call.1} parent=1 // pred_region
      %37 = vsyncadd [#allocation7], 0
      %s38 = sshll.u32 %s1, 4
      %s39 = int_to_ptr.hbm [resolvable:$true] %s38
      %s40 = sshll.u32 [#allocation6], 4
      %s41 = int_to_ptr.vmem [resolvable:$true] %s40
      %46 = dma.hbm_to_vmem [thread:$0]  %s39, 256, %s41, [#allocation7], 128, 128, 8
    $region9: #{tpu_custom_call.1} parent=1 // pred_fallthru
      _
    // Predicated region
    $region10: #{tpu_custom_call.1} parent=1 // pred_check
      _
    $region11: #{tpu_custom_call.1} parent=1 // pred_check_branch
      %48 = sbr.rel (0) target = $region13
    $region12: #{tpu_custom_call.1} parent=1 // pred_region
      %50 = vsyncadd [#allocation7], 0
      %s51 = sshll.u32 %s2, 4
      %s52 = int_to_ptr.hbm [resolvable:$true] %s51
      %s53 = sshll.u32 [#allocation8], 4
      %s54 = int_to_ptr.vmem [resolvable:$true] %s53
      %59 = dma.hbm_to_vmem [thread:$0]  %s52, 512, %s54, [#allocation7], 128, 128, 8
    $region13: #{tpu_custom_call.1} parent=1 // pred_fallthru
      _
    // Predicated region
    $region14: #{tpu_custom_call.1} parent=1 // pred_check
      _
    $region15: #{tpu_custom_call.1} parent=1 // pred_check_branch
      %61 = sbr.rel (0) target = $region17
    $region16: #{tpu_custom_call.1} parent=1 // pred_region
      %63 = vsyncadd [#allocation10], 0
      %s65 = sshll.u32 %s3, 4
      %s66 = int_to_ptr.hbm [resolvable:$true] %s65
      %s67 = sshll.u32 [#allocation9], 4
      %s68 = int_to_ptr.vmem [resolvable:$true] %s67
      %70 = dma.hbm_to_vmem [thread:$0]  %s66, 16, %s68, [#allocation10]
    $region17: #{tpu_custom_call.1} parent=1 // pred_fallthru
      _
    // Predicated region
    $region18: #{tpu_custom_call.1} parent=1 // pred_check
      _
    $region19: #{tpu_custom_call.1} parent=1 // pred_check_branch
      %72 = sbr.rel (0) target = $region21
    $region20: #{tpu_custom_call.1} parent=1 // pred_region
      %74 = vsyncadd [#allocation10], 0
      %s75 = sshll.u32 %s4, 4
      %s76 = int_to_ptr.hbm [resolvable:$true] %s75
      %s77 = sshll.u32 [#allocation11], 4
      %s78 = int_to_ptr.vmem [resolvable:$true] %s77
      %83 = dma.hbm_to_vmem [thread:$0]  %s76, 512, %s78, [#allocation10], 128, 128, 8
    $region21: #{tpu_custom_call.1} parent=1 // pred_fallthru
      _
    // Predicated region
    $region22: #{tpu_custom_call.1} parent=1 // pred_check
      _
    $region23: #{tpu_custom_call.1} parent=1 // pred_check_branch
      %85 = sbr.rel (0) target = $region25
    $region24: #{tpu_custom_call.1} parent=1 // pred_region
      %87 = vsyncadd [#allocation13], 0
      %s89 = sshll.u32 %s5, 4
      %s90 = int_to_ptr.hbm [resolvable:$true] %s89
      %s91 = sshll.u32 [#allocation12], 4
      %s92 = int_to_ptr.vmem [resolvable:$true] %s91
      %94 = dma.hbm_to_vmem [thread:$0]  %s90, 16, %s92, [#allocation13]
    $region25: #{tpu_custom_call.1} parent=1 // pred_fallthru
      _
    // Predicated region
    $region26: #{tpu_custom_call.1} parent=1 // pred_check
      _
    $region27: #{tpu_custom_call.1} parent=1 // pred_check_branch
      %96 = sbr.rel (0) target = $region29
    $region28: #{tpu_custom_call.1} parent=1 // pred_region
      _
    $region29: #{tpu_custom_call.1} parent=1 // pred_fallthru
      _
    // Predicated region
    $region30: #{tpu_custom_call.1} parent=1 // pred_check
      _
    $region31: #{tpu_custom_call.1} parent=1 // pred_check_branch
      %98 = sbr.rel (0) target = $region33
    $region32: #{tpu_custom_call.1} parent=1 // pred_region
      _
    $region33: #{tpu_custom_call.1} parent=1 // pred_fallthru
      _
    // Predicated region
    $region34: #{tpu_custom_call.1} parent=1 // pred_check
      _
    $region35: #{tpu_custom_call.1} parent=1 // pred_check_branch
      %100 = sbr.rel (0) target = $region37
    $region36: #{tpu_custom_call.1} parent=1 // pred_region
      %102 = vsyncadd [#allocation13], 0
      %s103 = sshll.u32 %s8, 4
      %s104 = int_to_ptr.hbm [resolvable:$true] %s103
      %s105 = sshll.u32 [#allocation14], 4
      %s106 = int_to_ptr.vmem [resolvable:$true] %s105
      %111 = dma.hbm_to_vmem [thread:$0]  %s104, 512, %s106, [#allocation13], 128, 128, 8
    $region37: #{tpu_custom_call.1} parent=1 // pred_fallthru
      _
    // Predicated region
    $region38: #{tpu_custom_call.1} parent=1 // pred_check
      _
    $region39: #{tpu_custom_call.1} parent=1 // pred_check_branch
      %113 = sbr.rel (0) target = $region41
    $region40: #{tpu_custom_call.1} parent=1 // pred_region
      %115 = vsyncadd [#allocation5], 0
      %s117 = sshll.u32 %s9, 4
      %s118 = int_to_ptr.vmem [resolvable:$true] %s117
      %120 = dma.vmem_to_smem %s118, 16, [#allocation15], [#allocation5]
    $region41: #{tpu_custom_call.1} parent=1 // pred_fallthru
      _
    // Predicated region
    $region42: #{tpu_custom_call.1} parent=1 // pred_check
      _
    $region43: #{tpu_custom_call.1} parent=1 // pred_check_branch
      %122 = sbr.rel (0) target = $region45
    $region44: #{tpu_custom_call.1} parent=1 // pred_region
      %124 = dma.done [#allocation3], 512
    $region45: #{tpu_custom_call.1} parent=1 // pred_fallthru
      _
    // Predicated region
    $region46: #{tpu_custom_call.1} parent=1 // pred_check
      _
    $region47: #{tpu_custom_call.1} parent=1 // pred_check_branch
      %126 = sbr.rel (0) target = $region49
    $region48: #{tpu_custom_call.1} parent=1 // pred_region
      %128 = dma.done [#allocation7], 256
    $region49: #{tpu_custom_call.1} parent=1 // pred_fallthru
      _
    // Predicated region
    $region50: #{tpu_custom_call.1} parent=1 // pred_check
      _
    $region51: #{tpu_custom_call.1} parent=1 // pred_check_branch
      %130 = sbr.rel (0) target = $region53
    $region52: #{tpu_custom_call.1} parent=1 // pred_region
      %132 = dma.done [#allocation7], 512
    $region53: #{tpu_custom_call.1} parent=1 // pred_fallthru
      _
    // Predicated region
    $region54: #{tpu_custom_call.1} parent=1 // pred_check
      _
    $region55: #{tpu_custom_call.1} parent=1 // pred_check_branch
      %134 = sbr.rel (0) target = $region57
    $region56: #{tpu_custom_call.1} parent=1 // pred_region
      %136 = dma.done [#allocation10], 16
    $region57: #{tpu_custom_call.1} parent=1 // pred_fallthru
      _
    // Predicated region
    $region58: #{tpu_custom_call.1} parent=1 // pred_check
      _
    $region59: #{tpu_custom_call.1} parent=1 // pred_check_branch
      %138 = sbr.rel (0) target = $region61
    $region60: #{tpu_custom_call.1} parent=1 // pred_region
      %140 = dma.done [#allocation10], 512
    $region61: #{tpu_custom_call.1} parent=1 // pred_fallthru
      _
    // Predicated region
    $region62: #{tpu_custom_call.1} parent=1 // pred_check
      _
    $region63: #{tpu_custom_call.1} parent=1 // pred_check_branch
      %142 = sbr.rel (0) target = $region65
    $region64: #{tpu_custom_call.1} parent=1 // pred_region
      %144 = dma.done [#allocation13], 16
    $region65: #{tpu_custom_call.1} parent=1 // pred_fallthru
      _
    // Predicated region
    $region66: #{tpu_custom_call.1} parent=1 // pred_check
      _
    $region67: #{tpu_custom_call.1} parent=1 // pred_check_branch
      %146 = sbr.rel (0) target = $region69
    $region68: #{tpu_custom_call.1} parent=1 // pred_region
      %148 = dma.done [#allocation13], 512
    $region69: #{tpu_custom_call.1} parent=1 // pred_fallthru
      _
    // Predicated region
    $region70: #{tpu_custom_call.1} parent=1 // pred_check
      _
    $region71: #{tpu_custom_call.1} parent=1 // pred_check_branch
      %150 = sbr.rel (0) target = $region73
    $region72: #{tpu_custom_call.1} parent=1 // pred_region
      %152 = dma.done [#allocation5], 16
    $region73: #{tpu_custom_call.1} parent=1 // pred_fallthru
      _
    %153 = sfence
    %v154 = vld [vmem:[#allocation2] sm:$0xff]
    %v155 = vld [vmem:[#allocation2 + $0x8] sm:$0xff]
    %v156 = vld [vmem:[#allocation2 + $0x10] sm:$0xff]
    %v157 = vld [vmem:[#allocation2 + $0x18] sm:$0xff]
    %v158 = vld [vmem:[#allocation6] sm:$0xff]
    %v159 = vld [vmem:[#allocation6 + $0x8] sm:$0xff]
    %v160 = vld [vmem:[#allocation8] sm:$0xff]
    %v161 = vld [vmem:[#allocation8 + $0x8] sm:$0xff]
    %v162 = vld [vmem:[#allocation8 + $0x10] sm:$0xff]
    %v163 = vld [vmem:[#allocation8 + $0x18] sm:$0xff]
    %v164 = vld [vmem:[#allocation9] sm:$0x1]
    %v166 = vperm.slane %v164, 0
    %vm168 = vcmask 261120
    %v170 = vsel %vm168, %v154, 0
    %v173 = vsel %vm168, %v155, 0
    %v176 = vsel %vm168, %v156, 0
    %v179 = vsel %vm168, %v157, 0
    %v182 = vsel %vm168, %v160, 0
    %v185 = vsel %vm168, %v161, 0
    %v188 = vsel %vm168, %v162, 0
    %v191 = vsel %vm168, %v163, 0
    %193 = vmatpush.xpose.msra.mxu0 0.0
    %194 = vmatpush.xpose.msra.mxu0 0.0
    %195 = vmatpush.xpose.msra.mxu0 0.0
    %196 = vmatpush.xpose.msra.mxu0 0.0
    %197 = vmatpush.xpose.msra.mxu0 0.0
    %198 = vmatpush.xpose.msra.mxu0 0.0
    %199 = vmatpush.xpose.msra.mxu0 0.0
    %200 = vmatpush.xpose.msra.mxu0 0.0
    %201 = vmatpush.xpose.msra.mxu0 0.0
    %202 = vmatpush.xpose.msra.mxu0 0.0
    %203 = vmatpush.xpose.msra.mxu0 0.0
    %204 = vmatpush.xpose.msra.mxu0 0.0
    %205 = vmatpush.xpose.msra.mxu0 %v191
    %206 = vmatpush.xpose.msra.mxu0 %v188
    %207 = vmatpush.xpose.msra.mxu0 %v185
    %208 = vmatpush.xpose.msra.mxu0 %v182
    %209 = vmatmul.f32.gmra.mxu0 %v170
    %v210 = vpop.f32.mrf.mxu0
    %v211 = vadd.f32 %v166, %v210
    %212 = vmatmul.f32.gmra.mxu0 %v173
    %v213 = vpop.f32.mrf.mxu0
    %v214 = vadd.f32 %v166, %v213
    %215 = vmatmul.f32.gmra.mxu0 %v176
    %v216 = vpop.f32.mrf.mxu0
    %v217 = vadd.f32 %v166, %v216
    %218 = vmatmul.f32.gmra.mxu0 %v179
    %v219 = vpop.f32.mrf.mxu0
    %v220 = vadd.f32 %v166, %v219
    %221 = vdwg.mxu0
    %v222 = vmax.f32 %v211, 0.0
    %v223 = vmax.f32 %v214, 0.0
    %v224 = vmax.f32 %v217, 0.0
    %v225 = vmax.f32 %v220, 0.0
    %v226 = vld [vmem:[#allocation11] sm:$0xff]
    %v227 = vld [vmem:[#allocation11 + $0x8] sm:$0xff]
    %v228 = vld [vmem:[#allocation11 + $0x10] sm:$0xff]
    %v229 = vld [vmem:[#allocation11 + $0x18] sm:$0xff]
    %v230 = vld [vmem:[#allocation12] sm:$0x1]
    %v232 = vperm.slane %v230, 0
    %v235 = vsel %vm168, %v158, 0
    %v238 = vsel %vm168, %v159, 0
    %v241 = vsel %vm168, %v226, 0
    %v244 = vsel %vm168, %v227, 0
    %v247 = vsel %vm168, %v228, 0
    %v250 = vsel %vm168, %v229, 0
    %252 = vmatpush.xpose.msra.mxu0 0.0
    %253 = vmatpush.xpose.msra.mxu0 0.0
    %254 = vmatpush.xpose.msra.mxu0 0.0
    %255 = vmatpush.xpose.msra.mxu0 0.0
    %256 = vmatpush.xpose.msra.mxu0 0.0
    %257 = vmatpush.xpose.msra.mxu0 0.0
    %258 = vmatpush.xpose.msra.mxu0 0.0
    %259 = vmatpush.xpose.msra.mxu0 0.0
    %260 = vmatpush.xpose.msra.mxu0 0.0
    %261 = vmatpush.xpose.msra.mxu0 0.0
    %262 = vmatpush.xpose.msra.mxu0 0.0
    %263 = vmatpush.xpose.msra.mxu0 0.0
    %264 = vmatpush.xpose.msra.mxu0 %v250
    %265 = vmatpush.xpose.msra.mxu0 %v247
    %266 = vmatpush.xpose.msra.mxu0 %v244
    %267 = vmatpush.xpose.msra.mxu0 %v241
    %268 = vmatmul.f32.gmra.mxu0 %v235
    %v269 = vpop.f32.mrf.mxu0
    %v270 = vadd.f32 %v232, %v269
    %271 = vmatmul.f32.gmra.mxu0 %v238
    %v272 = vpop.f32.mrf.mxu0
    %v273 = vadd.f32 %v232, %v272
    %274 = vdwg.mxu0
    %v275 = vmax.f32 %v270, 0.0
    %v276 = vmax.f32 %v273, 0.0
    %v277 = vld [vmem:[%s6] sm:$0x3]
    %v279 = vsel %vm168, %v277, 0
    %v282 = vsel %vm168, %v222, 0
    %v285 = vsel %vm168, %v223, 0
    %v288 = vsel %vm168, %v224, 0
    %v291 = vsel %vm168, %v225, 0
    %293 = vmatpush.xpose.msra.mxu0 0.0
    %294 = vmatpush.xpose.msra.mxu0 0.0
    %295 = vmatpush.xpose.msra.mxu0 0.0
    %296 = vmatpush.xpose.msra.mxu0 0.0
    %297 = vmatpush.xpose.msra.mxu0 0.0
    %298 = vmatpush.xpose.msra.mxu0 0.0
    %299 = vmatpush.xpose.msra.mxu0 0.0
    %300 = vmatpush.xpose.msra.mxu0 0.0
    %301 = vmatpush.xpose.msra.mxu0 0.0
    %302 = vmatpush.xpose.msra.mxu0 0.0
    %303 = vmatpush.xpose.msra.mxu0 0.0
    %304 = vmatpush.xpose.msra.mxu0 0.0
    %305 = vmatpush.xpose.msra.mxu0 %v291
    %306 = vmatpush.xpose.msra.mxu0 %v288
    %307 = vmatpush.xpose.msra.mxu0 %v285
    %308 = vmatpush.xpose.msra.mxu0 %v282
    %309 = vmatmul.f32.gmra.mxu0 %v279
    %v310 = vpop.f32.mrf.mxu0
    %v311 = vadd.f32 0.0, %v310
    %312 = vdwg.mxu0
    %v313 = vld [vmem:[%s7] sm:$0x3]
    %v315 = vsel %vm168, %v275, 0
    %v318 = vsel %vm168, %v276, 0
    %v321 = vsel %vm168, %v313, 0
    %323 = vmatpush.xpose.msra.mxu0 0.0
    %324 = vmatpush.xpose.msra.mxu0 0.0
    %325 = vmatpush.xpose.msra.mxu0 0.0
    %326 = vmatpush.xpose.msra.mxu0 0.0
    %327 = vmatpush.xpose.msra.mxu0 0.0
    %328 = vmatpush.xpose.msra.mxu0 0.0
    %329 = vmatpush.xpose.msra.mxu0 0.0
    %330 = vmatpush.xpose.msra.mxu0 0.0
    %331 = vmatpush.xpose.msra.mxu0 0.0
    %332 = vmatpush.xpose.msra.mxu0 0.0
    %333 = vmatpush.xpose.msra.mxu0 0.0
    %334 = vmatpush.xpose.msra.mxu0 0.0
    %335 = vmatpush.xpose.msra.mxu0 0.0
    %336 = vmatpush.xpose.msra.mxu0 0.0
    %337 = vmatpush.xpose.msra.mxu0 0.0
    %338 = vmatpush.xpose.msra.mxu0 %v321
    %339 = vmatmul.f32.gmra.mxu0 %v315
    %v340 = vpop.f32.mrf.mxu0
    %v341 = vadd.f32 0.0, %v340
    %342 = vmatmul.f32.gmra.mxu0 %v318
    %v343 = vpop.f32.mrf.mxu0
    %v344 = vadd.f32 0.0, %v343
    %345 = vdwg.mxu0
    %v346 = vld [vmem:[#allocation14] sm:$0xff]
    %v347 = vld [vmem:[#allocation14 + $0x8] sm:$0xff]
    %v348 = vld [vmem:[#allocation14 + $0x10] sm:$0xff]
    %v349 = vld [vmem:[#allocation14 + $0x18] sm:$0xff]
    %350 = vmatpush.msra.mxu0 0.0
    %351 = vmatpush.msra.mxu0 0.0
    %352 = vmatpush.msra.mxu0 0.0
    %353 = vmatpush.msra.mxu0 0.0
    %354 = vmatpush.msra.mxu0 0.0
    %355 = vmatpush.msra.mxu0 0.0
    %356 = vmatpush.msra.mxu0 0.0
    %357 = vmatpush.msra.mxu0 0.0
    %358 = vmatpush.msra.mxu0 0.0
    %359 = vmatpush.msra.mxu0 0.0
    %360 = vmatpush.msra.mxu0 0.0
    %361 = vmatpush.msra.mxu0 0.0
    %362 = vmatpush.msra.mxu0 %v349
    %363 = vmatpush.msra.mxu0 %v348
    %364 = vmatpush.msra.mxu0 %v347
    %365 = vmatpush.msra.mxu0 %v346
    %366 = vmatmul.f32.gmra.mxu0 %v315
    %v367 = vpop.f32.mrf.mxu0
    %v368 = vadd.f32 0.0, %v367
    %369 = vmatmul.f32.gmra.mxu0 %v318
    %v370 = vpop.f32.mrf.mxu0
    %v371 = vadd.f32 0.0, %v370
    %372 = vdwg.mxu0
    %374 = vset.pattern.permute.xlu0 0
    %375 = vperm.xlu0 %374, %v341
    %v376 = vpop.permute.xlu0 %375
    %v379 = vsel %vm168, %v368, 0
    %381 = vmatpush.xpose.msra.mxu0 0.0
    %382 = vmatpush.xpose.msra.mxu0 0.0
    %383 = vmatpush.xpose.msra.mxu0 0.0
    %384 = vmatpush.xpose.msra.mxu0 0.0
    %385 = vmatpush.xpose.msra.mxu0 0.0
    %386 = vmatpush.xpose.msra.mxu0 0.0
    %387 = vmatpush.xpose.msra.mxu0 0.0
    %388 = vmatpush.xpose.msra.mxu0 0.0
    %389 = vmatpush.xpose.msra.mxu0 0.0
    %390 = vmatpush.xpose.msra.mxu0 0.0
    %391 = vmatpush.xpose.msra.mxu0 0.0
    %392 = vmatpush.xpose.msra.mxu0 0.0
    %393 = vmatpush.xpose.msra.mxu0 0.0
    %394 = vmatpush.xpose.msra.mxu0 0.0
    %395 = vmatpush.xpose.msra.mxu0 %v285
    %396 = vmatpush.xpose.msra.mxu0 %v282
    %397 = vmatmul.f32.gmra.mxu0 %v379
    %v398 = vpop.f32.mrf.mxu0
    %v399 = vadd.f32 %v376, %v398
    %400 = vdwg.mxu0
    %v401 = vperm.slane %v311, 0
    %v402 = vadd.f32 %v399, %v401
    %s403 = sld [smem:[#allocation15]]
    %v404 = vstv %s403
    %v405 = vadd.f32 %v402, %v404
    %406 = vset.pattern.permute.xlu0 1
    %407 = vperm.xlu0 %406, %v341
    %v408 = vpop.permute.xlu0 %407
    %410 = vrot.lane.b32.xlu0 %v368, 96
    %v411 = vpop.permute.xlu0 %410
    %v412 = vsel %vm168, %v411, 0
    %414 = vmatpush.xpose.msra.mxu0 0.0
    %415 = vmatpush.xpose.msra.mxu0 0.0
    %416 = vmatpush.xpose.msra.mxu0 0.0
    %417 = vmatpush.xpose.msra.mxu0 0.0
    %418 = vmatpush.xpose.msra.mxu0 0.0
    %419 = vmatpush.xpose.msra.mxu0 0.0
    %420 = vmatpush.xpose.msra.mxu0 0.0
    %421 = vmatpush.xpose.msra.mxu0 0.0
    %422 = vmatpush.xpose.msra.mxu0 0.0
    %423 = vmatpush.xpose.msra.mxu0 0.0
    %424 = vmatpush.xpose.msra.mxu0 0.0
    %425 = vmatpush.xpose.msra.mxu0 0.0
    %426 = vmatpush.xpose.msra.mxu0 0.0
    %427 = vmatpush.xpose.msra.mxu0 0.0
    %428 = vmatpush.xpose.msra.mxu0 %v285
    %429 = vmatpush.xpose.msra.mxu0 %v282
    %430 = vmatmul.f32.gmra.mxu0 %v412
    %v431 = vpop.f32.mrf.mxu0
    %v432 = vadd.f32 %v408, %v431
    %433 = vdwg.mxu0
    %v434 = vperm.slane %v311, 1
    %v435 = vadd.f32 %v432, %v434
    %s436 = sld [smem:[#allocation15 + $0x1]]
    %v437 = vstv %s436
    %v438 = vadd.f32 %v435, %v437
    %440 = vset.pattern.permute.xlu0 0
    %441 = vperm.xlu0 %440, %v344
    %v442 = vpop.permute.xlu0 %441
    %v445 = vsel %vm168, %v371, 0
    %447 = vmatpush.xpose.msra.mxu0 0.0
    %448 = vmatpush.xpose.msra.mxu0 0.0
    %449 = vmatpush.xpose.msra.mxu0 0.0
    %450 = vmatpush.xpose.msra.mxu0 0.0
    %451 = vmatpush.xpose.msra.mxu0 0.0
    %452 = vmatpush.xpose.msra.mxu0 0.0
    %453 = vmatpush.xpose.msra.mxu0 0.0
    %454 = vmatpush.xpose.msra.mxu0 0.0
    %455 = vmatpush.xpose.msra.mxu0 0.0
    %456 = vmatpush.xpose.msra.mxu0 0.0
    %457 = vmatpush.xpose.msra.mxu0 0.0
    %458 = vmatpush.xpose.msra.mxu0 0.0
    %459 = vmatpush.xpose.msra.mxu0 0.0
    %460 = vmatpush.xpose.msra.mxu0 0.0
    %461 = vmatpush.xpose.msra.mxu0 %v291
    %462 = vmatpush.xpose.msra.mxu0 %v288
    %463 = vmatmul.f32.gmra.mxu0 %v445
    %v464 = vpop.f32.mrf.mxu0
    %v465 = vadd.f32 %v442, %v464
    %466 = vdwg.mxu0
    %468 = vrot.lane.b32.xlu0 %v401, 112
    %v469 = vpop.permute.xlu0 %468
    %v471 = vadd.f32 %v465, %v469
    %v472 = vadd.f32 %v471, %v404
    %473 = vset.pattern.permute.xlu0 1
    %474 = vperm.xlu0 %473, %v344
    %v475 = vpop.permute.xlu0 %474
    %477 = vrot.lane.b32.xlu0 %v371, 96
    %v478 = vpop.permute.xlu0 %477
    %v479 = vsel %vm168, %v478, 0
    %481 = vmatpush.xpose.msra.mxu0 0.0
    %482 = vmatpush.xpose.msra.mxu0 0.0
    %483 = vmatpush.xpose.msra.mxu0 0.0
    %484 = vmatpush.xpose.msra.mxu0 0.0
    %485 = vmatpush.xpose.msra.mxu0 0.0
    %486 = vmatpush.xpose.msra.mxu0 0.0
    %487 = vmatpush.xpose.msra.mxu0 0.0
    %488 = vmatpush.xpose.msra.mxu0 0.0
    %489 = vmatpush.xpose.msra.mxu0 0.0
    %490 = vmatpush.xpose.msra.mxu0 0.0
    %491 = vmatpush.xpose.msra.mxu0 0.0
    %492 = vmatpush.xpose.msra.mxu0 0.0
    %493 = vmatpush.xpose.msra.mxu0 0.0
    %494 = vmatpush.xpose.msra.mxu0 0.0
    %495 = vmatpush.xpose.msra.mxu0 %v291
    %496 = vmatpush.xpose.msra.mxu0 %v288
    %497 = vmatmul.f32.gmra.mxu0 %v479
    %v498 = vpop.f32.mrf.mxu0
    %v499 = vadd.f32 %v475, %v498
    %500 = vdwg.mxu0
    %502 = vrot.lane.b32.xlu0 %v434, 112
    %v503 = vpop.permute.xlu0 %502
    %v505 = vadd.f32 %v499, %v503
    %v506 = vadd.f32 %v505, %v437
    %vm507 = vcmask 130048
    %508 = vst.msk [vmem:[#allocation16] sm:$0xff] %vm507, %v405
    %509 = vst.msk [vmem:[#allocation16 + $0x8] sm:$0xff] %vm507, %v438
    %510 = vst.msk [vmem:[#allocation16 + $0x10] sm:$0xff] %vm507, %v472
    %511 = vst.msk [vmem:[#allocation16 + $0x18] sm:$0xff] %vm507, %v506
    // Predicated region
    $region74: #{tpu_custom_call.1} parent=1 // pred_check
      _
    $region75: #{tpu_custom_call.1} parent=1 // pred_check_branch
      %513 = sbr.rel (0) target = $region77
    $region76: #{tpu_custom_call.1} parent=1 // pred_region
      %515 = vsyncadd [#allocation4], 0
      %s516 = sshll.u32 [#allocation16], 4
      %s517 = int_to_ptr.vmem [resolvable:$true] %s516
      %s518 = sshll.u32 %s10, 4
      %s519 = int_to_ptr.hbm [resolvable:$true] %s518
      %524 = dma.vmem_to_hbm [thread:$0]  %s517, 512, %s519, [#allocation4], 128, 128, 8
    $region77: #{tpu_custom_call.1} parent=1 // pred_fallthru
      _
    // Predicated region
    $region78: #{tpu_custom_call.1} parent=1 // pred_check
      _
    $region79: #{tpu_custom_call.1} parent=1 // pred_check_branch
      %526 = sbr.rel (0) target = $region81
    $region80: #{tpu_custom_call.1} parent=1 // pred_region
      %528 = dma.done [#allocation4], 512
    $region81: #{tpu_custom_call.1} parent=1 // pred_fallthru
      _
    %529 = vsyncpa [#allocation3], 1
    %530 = vsyncpa [#allocation7], 1
    %531 = vsyncpa [#allocation10], 1
    %532 = vsyncpa [#allocation13], 1
    %533 = vsyncpa [#allocation4], 1
    %534 = vsyncpa [#allocation5], 1

</llo_original>
